<compile_context>
chip_gen: v6e
topology: v6e:2x2x1
jax: 0.10.0
libtpu: 0.0.40
codegen_flags: <defaults>
</compile_context>

<pallas_src>
import functools
import math

import jax
import jax.numpy as jnp
from jax.experimental import pallas as pl
from jax.experimental.pallas import tpu as pltpu

_NEG_BIG = 1.0e9  # additive mask magnitude; exp(-(BIG - energy_range)) == 0 in f32


def _round_up(x, m):
    return (x + m - 1) // m * m


def _gaussian_upsample_kernel(t_ref, c_ref, nmask_ref, hs_ref, o_ref, *,
                              use_bf16_matmul, approx_recip):
    """One (batch, T_feats-tile) block.

    t_ref     : (1, TF, 1)       sqrt(delta) * frame_index * h_mask  (column)
    c_ref     : (1, 1, T_text)   sqrt(delta) * token centers         (row)
    nmask_ref : (1, 1, T_text)   0 where valid, -BIG where masked    (row)
    hs_ref    : (1, T_text, A)   hidden states (resident across TF tiles)
    o_ref     : (1, TF, A)
    """
    t = t_ref[0]                        # (TF, 1)
    c = c_ref[0]                        # (1, T_text)
    d = t - c                           # (TF, T_text)
    energy = nmask_ref[0] - d * d       # additive mask; delta already folded

    # Softmax over T_text with deferred normalization.
    m = jnp.max(energy, axis=-1, keepdims=True)     # (TF, 1)
    p = jnp.exp(energy - m)                         # (TF, T_text), unnormalized
    denom = jnp.sum(p, axis=-1, keepdims=True)      # (TF, 1)

    hs = hs_ref[0]                                  # (T_text, A)
    if use_bf16_matmul:
        p = p.astype(jnp.bfloat16)
        hs = hs.astype(jnp.bfloat16)
    acc = jnp.dot(p, hs, preferred_element_type=jnp.float32)   # (TF, A) on MXU

    inv = pl.reciprocal(denom, approx=approx_recip)             # (TF, 1)
    o_ref[0] = (acc * inv).astype(o_ref.dtype)


def gaussian_upsampling(hs, ds, h_masks=None, d_masks=None, delta=0.1, *,
                        tile_feats=256, use_bf16_matmul=False,
                        approx_recip=False):
    """Gaussian upsampling forward pass matching the PyTorch module."""
    B, T_text, adim = hs.shape
    if h_masks is None:
        # TODO(synk): h_masks=None implies T_feats = ds.sum(), a data-dependent
        # dynamic output length with no static-shape JAX/Pallas equivalent.
        raise NotImplementedError("h_masks is required (static T_feats).")
    T_feats = h_masks.shape[-1]

    sqrt_delta = math.sqrt(float(delta))
    ds_f = ds.astype(jnp.float32)
    # Token centers, pre-scaled by sqrt(delta) (tiny O(T_text) glue).
    c = (jnp.cumsum(ds_f, axis=-1) - 0.5 * ds_f) * sqrt_delta          # (B, T_text)
    # Frame-index column, masked and pre-scaled by sqrt(delta).
    t = (jnp.arange(T_feats, dtype=jnp.float32)[None, :]
         * h_masks.astype(jnp.float32)) * sqrt_delta                   # (B, T_feats)
    # Additive duration mask (0 = keep, -BIG = drop). For any row with at least
    # one valid token this matches masked_fill(-inf) exactly (exp underflows to
    # 0); fully-masked rows become a uniform softmax instead of NaN.
    if d_masks is None:
        nmask = jnp.zeros((B, T_text), dtype=jnp.float32)
    else:
        nmask = jnp.where(d_masks, 0.0, -_NEG_BIG).astype(jnp.float32)

    # ---- Pad to TPU-friendly (8, 128) multiples (no remainder tiles). ----
    adim_p = _round_up(adim, 128)
    T_text_p = _round_up(T_text, 128)
    T_feats_8 = _round_up(T_feats, 8)
    tf = min(_round_up(tile_feats, 8), T_feats_8)
    T_feats_p = _round_up(T_feats_8, tf)

    hs_p = jnp.pad(hs, ((0, 0), (0, T_text_p - T_text), (0, adim_p - adim)))
    c_p = jnp.pad(c, ((0, 0), (0, T_text_p - T_text)))
    nmask_p = jnp.pad(nmask, ((0, 0), (0, T_text_p - T_text)),
                      constant_values=-_NEG_BIG)   # padded tokens are masked
    t_p = jnp.pad(t, ((0, 0), (0, T_feats_p - T_feats)))

    t_col = t_p.reshape(B, T_feats_p, 1)
    c_row = c_p.reshape(B, 1, T_text_p)
    n_row = nmask_p.reshape(B, 1, T_text_p)

    kernel = functools.partial(_gaussian_upsample_kernel,
                               use_bf16_matmul=use_bf16_matmul,
                               approx_recip=approx_recip)

    grid = (B, T_feats_p // tf)
    out = pl.pallas_call(
        kernel,
        out_shape=jax.ShapeDtypeStruct((B, T_feats_p, adim_p), hs.dtype),
        grid=grid,
        in_specs=[
            pl.BlockSpec((1, tf, 1), lambda b, f: (b, f, 0)),            # t column
            pl.BlockSpec((1, 1, T_text_p), lambda b, f: (b, 0, 0)),      # centers
            pl.BlockSpec((1, 1, T_text_p), lambda b, f: (b, 0, 0)),      # add. mask
            pl.BlockSpec((1, T_text_p, adim_p), lambda b, f: (b, 0, 0)), # hs
        ],
        out_specs=pl.BlockSpec((1, tf, adim_p), lambda b, f: (b, f, 0)),
        compiler_params=pltpu.CompilerParams(
            dimension_semantics=("parallel", "parallel"),
            vmem_limit_bytes=32 * 1024 * 1024),
    )(t_col, c_row, n_row, hs_p)

    return out[:, :T_feats, :adim]


def gaussian_upsampling_ref(hs, ds, h_masks, d_masks, delta=0.1):
    """Pure-JAX reference mirroring the PyTorch forward."""
    B, T_text, _ = hs.shape
    T_feats = h_masks.shape[-1]
    t = jnp.arange(T_feats, dtype=jnp.float32)[None, :].repeat(B, axis=0)
    t = t * h_masks.astype(jnp.float32)
    ds_f = ds.astype(jnp.float32)
    c = jnp.cumsum(ds_f, axis=-1) - ds_f / 2.0
    energy = -delta * (t[:, :, None] - c[:, None, :]) ** 2
    energy = jnp.where(d_masks[:, None, :], energy, -jnp.inf)
    p_attn = jax.nn.softmax(energy, axis=2)
    return jnp.matmul(p_attn, hs)


if __name__ == "__main__":
    key = jax.random.PRNGKey(0)
    k_hs, k_ds = jax.random.split(key)

    B, T_text, adim = 2, 8, 32
    T_feats = 16

    hs = jax.random.normal(k_hs, (B, T_text, adim), dtype=jnp.float32)
    # integer-ish durations in [1, 3]
    ds = jax.random.randint(k_ds, (B, T_text), 1, 4).astype(jnp.float32)

    # h_masks: first batch fully valid, second batch valid for first 12 frames
    h_masks = jnp.stack([
        jnp.ones((T_feats,), dtype=bool),
        jnp.arange(T_feats) < 12,
    ])
    # d_masks: first batch all tokens valid, second batch masks the last token
    d_masks = jnp.stack([
        jnp.ones((T_text,), dtype=bool),
        jnp.arange(T_text) < (T_text - 1),
    ])

    out = gaussian_upsampling(hs, ds, h_masks, d_masks, delta=0.1)
    out = jax.block_until_ready(out)

    ref = gaussian_upsampling_ref(hs, ds, h_masks, d_masks, delta=0.1)
    assert out.shape == (B, T_feats, adim)
    assert jnp.allclose(out, ref, atol=1e-4, rtol=1e-4), (
        f"max abs err = {jnp.max(jnp.abs(out - ref))}")

    print("KERNEL_OK")
</pallas_src>

<mosaic_0001>
module attributes {stable_mosaic.version = 11 : i64} {
  func.func @_gaussian_upsample_kernel(%arg0: i32, %arg1: i32, %arg2: memref<1x16x1xf32, #tpu.memory_space<vmem>>, %arg3: memref<1x1x128xf32, #tpu.memory_space<vmem>>, %arg4: memref<1x1x128xf32, #tpu.memory_space<vmem>>, %arg5: memref<1x128x128xf32, #tpu.memory_space<vmem>>, %arg6: memref<1x16x128xf32, #tpu.memory_space<vmem>>) attributes {dimension_semantics = [#tpu.dimension_semantics<parallel>, #tpu.dimension_semantics<parallel>], iteration_bounds = array<i64: 2, 1>, scalar_prefetch = 0 : i64, scratch_operands = 0 : i64, tpu.core_type = #tpu.core_type<tc>, window_params = [{transform_indices = @transform_0, window_bounds = array<i64: 1, 16, 1>}, {transform_indices = @transform_1, window_bounds = array<i64: 1, 1, 128>}, {transform_indices = @transform_2, window_bounds = array<i64: 1, 1, 128>}, {transform_indices = @transform_3, window_bounds = array<i64: 1, 128, 128>}, {transform_indices = @transform_4, window_bounds = array<i64: 1, 16, 128>}]} {
    %c0 = arith.constant 0 : index
    %c0_0 = arith.constant 0 : index
    %c0_1 = arith.constant 0 : index
    %0 = vector.load %arg2[%c0, %c0_0, %c0_1] : memref<1x16x1xf32, #tpu.memory_space<vmem>>, vector<1x16x1xf32>
    %1 = vector.shape_cast %0 : vector<1x16x1xf32> to vector<16x1xf32>
    %c0_2 = arith.constant 0 : index
    %c0_3 = arith.constant 0 : index
    %c0_4 = arith.constant 0 : index
    %2 = vector.load %arg3[%c0_2, %c0_3, %c0_4] : memref<1x1x128xf32, #tpu.memory_space<vmem>>, vector<1x1x128xf32>
    %3 = vector.shape_cast %2 : vector<1x1x128xf32> to vector<1x128xf32>
    %4 = vector.broadcast %1 : vector<16x1xf32> to vector<16x128xf32>
    %5 = vector.broadcast %3 : vector<1x128xf32> to vector<16x128xf32>
    %6 = arith.subf %4, %5 : vector<16x128xf32>
    %c0_5 = arith.constant 0 : index
    %c0_6 = arith.constant 0 : index
    %c0_7 = arith.constant 0 : index
    %7 = vector.load %arg4[%c0_5, %c0_6, %c0_7] : memref<1x1x128xf32, #tpu.memory_space<vmem>>, vector<1x1x128xf32>
    %8 = vector.shape_cast %7 : vector<1x1x128xf32> to vector<1x128xf32>
    %9 = arith.mulf %6, %6 : vector<16x128xf32>
    %10 = vector.broadcast %8 : vector<1x128xf32> to vector<16x128xf32>
    %11 = arith.subf %10, %9 : vector<16x128xf32>
    %cst = arith.constant dense<0xFF800000> : vector<16xf32>
    %12 = vector.multi_reduction <maximumf>, %11, %cst [1] : vector<16x128xf32> to vector<16xf32>
    %13 = vector.shape_cast %12 : vector<16xf32> to vector<16x1xf32>
    %14 = vector.broadcast %13 : vector<16x1xf32> to vector<16x128xf32>
    %15 = arith.subf %11, %14 : vector<16x128xf32>
    %16 = math.exp %15 : vector<16x128xf32>
    %cst_8 = arith.constant dense<0.000000e+00> : vector<16xf32>
    %17 = vector.multi_reduction <add>, %16, %cst_8 [1] : vector<16x128xf32> to vector<16xf32>
    %18 = vector.shape_cast %17 : vector<16xf32> to vector<16x1xf32>
    %c0_9 = arith.constant 0 : index
    %c0_10 = arith.constant 0 : index
    %c0_11 = arith.constant 0 : index
    %19 = vector.load %arg5[%c0_9, %c0_10, %c0_11] : memref<1x128x128xf32, #tpu.memory_space<vmem>>, vector<1x128x128xf32>
    %20 = vector.shape_cast %19 : vector<1x128x128xf32> to vector<128x128xf32>
    %cst_12 = arith.constant dense<0.000000e+00> : vector<16x128xf32>
    %21 = tpu.matmul %16, %20, %cst_12 {dimension_numbers = #tpu.dot_dimension_numbers<[1], [0], [0], [1], [0, 0, 1, 1], [], []>} : vector<16x128xf32>, vector<128x128xf32>, vector<16x128xf32> -> vector<16x128xf32>
    %22 = tpu.reciprocal %18 : vector<16x1xf32> -> vector<16x1xf32>
    %23 = vector.broadcast %22 : vector<16x1xf32> to vector<16x128xf32>
    %24 = arith.mulf %21, %23 : vector<16x128xf32>
    %c0_13 = arith.constant 0 : index
    %c0_14 = arith.constant 0 : index
    %c0_15 = arith.constant 0 : index
    %25 = vector.load %arg6[%c0_13, %c0_14, %c0_15] : memref<1x16x128xf32, #tpu.memory_space<vmem>>, vector<1x16x128xf32>
    %26 = vector.shape_cast %25 : vector<1x16x128xf32> to vector<16x128xf32>
    %27 = vector.shape_cast %24 : vector<16x128xf32> to vector<1x16x128xf32>
    tpu.vector_store %arg6[%c0_13, %c0_14, %c0_15], %27 {strides = array<i32>} : memref<1x16x128xf32, #tpu.memory_space<vmem>>, vector<1x16x128xf32>,
    return
  }
  func.func @transform_0(%arg0: i32, %arg1: i32) -> (i32, i32, i32) {
    %c0_i32 = arith.constant 0 : i32
    %c0_i32_0 = arith.constant 0 : i32
    return %arg0, %arg1, %c0_i32 : i32, i32, i32
  }
  func.func @transform_1(%arg0: i32, %arg1: i32) -> (i32, i32, i32) {
    %c0_i32 = arith.constant 0 : i32
    %c0_i32_0 = arith.constant 0 : i32
    %c0_i32_1 = arith.constant 0 : i32
    return %arg0, %c0_i32, %c0_i32_0 : i32, i32, i32
  }
  func.func @transform_2(%arg0: i32, %arg1: i32) -> (i32, i32, i32) {
    %c0_i32 = arith.constant 0 : i32
    %c0_i32_0 = arith.constant 0 : i32
    %c0_i32_1 = arith.constant 0 : i32
    return %arg0, %c0_i32, %c0_i32_0 : i32, i32, i32
  }
  func.func @transform_3(%arg0: i32, %arg1: i32) -> (i32, i32, i32) {
    %c0_i32 = arith.constant 0 : i32
    %c0_i32_0 = arith.constant 0 : i32
    %c0_i32_1 = arith.constant 0 : i32
    return %arg0, %c0_i32, %c0_i32_0 : i32, i32, i32
  }
  func.func @transform_4(%arg0: i32, %arg1: i32) -> (i32, i32, i32) {
    %c0_i32 = arith.constant 0 : i32
    %c0_i32_0 = arith.constant 0 : i32
    return %arg0, %arg1, %c0_i32 : i32, i32, i32
  }
}

</mosaic_0001>

<llo_original>
// kernel: tpu_custom_call.1
$region0: #{tpu_custom_call.1}
  #allocation0 [shape = 'u32[]', space=smem, size = 0x4, offset = 0x4, fixed_abs, tag = 'smem constant byte address 0x4 - core index']
  #allocation1 [shape = 'u32[144,128]{1,0:T(1,128)}', space=vmem, size = 0x12000, scoped, tag = 'internal scratch']
  %s0 = inlined_call_operand.vmem [shape: f32[2,16,1], index: 0, kind: input, shape index: {}]
  %s1 = inlined_call_operand.vmem [shape: f32[2,1,128], index: 1, kind: input, shape index: {}]
  %s2 = inlined_call_operand.vmem [shape: f32[2,1,128], index: 2, kind: input, shape index: {}]
  %s3 = inlined_call_operand.hbm [shape: f32[2,128,128], index: 3, kind: input, shape index: {}]
  %s4 = inlined_call_operand.hbm [shape: f32[2,16,128], index: 4, kind: output, shape index: {}]
  %s5 = sld [smem:[#allocation0]]
  $region53: #{tpu_custom_call.1} parent=0
    _
  %s7 = ssub.s32 1, %s5
  %s8 = scalar_select 0, %s7, %s5
  $region1: #{tpu_custom_call.1} parent=0
    #allocation2 [shape = 'u8[131072]{0}', space=vmem, size = 0x20000, scoped, tag = 'input window, operand 3']
    #allocation3 [shape = 's32[2]{0}', space=sflag, size = 0x8, scoped, tag = 'scoped memory for tpu_custom_call.1']
    #allocation4 [shape = 's32[2]{0}', space=sflag, size = 0x8, scoped, tag = 'scoped memory for tpu_custom_call.1']
    #allocation5 [shape = 'u8[16384]{0}', space=vmem, size = 0x4000, scoped, tag = 'output window, operand 0']
    %9 = vsyncpa [#allocation3], 0
    %s10 = scalar_lea.sflag [#allocation3], 1
    %11 = vsyncpa %s10, 0
    %12 = vsyncpa [#allocation4], 0
    %s13 = scalar_lea.sflag [#allocation4], 1
    %14 = vsyncpa %s13, 0
    loop: start=0, step=1, limit=4
    $region2: #{tpu_custom_call.1} parent=1 // loop_pre_header
      _
    $region3: #{tpu_custom_call.1} parent=1 // loop_header
      %s16 = sphi 0, %s20
      %p17 = scmp.ge.s32.totalorder %s16, 4
      %s23 = sphi 0, %s35
      %s24 = sphi 0, %s31
      %s25 = sphi 0, %s23
      %s26 = sphi 0, %s24
      %s27 = sphi 0, %s25
      %s28 = sphi 0, %s26
      %s40 = sphi 0, %s42
      %s43 = sphi 0, %s40
      %s44 = sphi 0, %s43
      %s60 = sphi 0, %s44
      %s66 = sphi 0, %s68
      %s69 = sphi 0, %s66
      %s70 = sphi 0, %s69
      %s86 = sphi 0, %s70
      %s92 = sphi 0, %s94
      %s95 = sphi 0, %s92
      %s96 = sphi 0, %s95
      %s112 = sphi 0, %s96
      %s118 = sphi 0, %s120
      %s121 = sphi 0, %s118
      %s122 = sphi 0, %s121
      %s138 = sphi 0, %s122
      %s146 = sphi 0, %s148
      %s149 = sphi 0, %s146
      %s150 = sphi 0, %s149
      %s166 = sphi 0, %s150
    $region4: #{tpu_custom_call.1} parent=1 // loop_header_branch
      %19 = sbr.rel (%p17) target = $region8
    $region5: #{tpu_custom_call.1} parent=1 // loop_body
      %s21 = ssub.s32 %s16, 1
      %s22 = ssub.s32 %s16, 2
      %s29 = sadd.s32 1, %s24
      %p30 = scmp.ge.s32.totalorder %s29, 1
      %s31 = scalar_select %p30, 0, %s29
      %s32 = sadd.s32 1, %s23
      %s33 = scalar_select %p30, %s32, %s23
      %p34 = scmp.ge.s32.totalorder %s33, 2
      %s35 = scalar_select %p34, 0, %s33
      %s36 = ssub.s32 %s23, %s35
      %s37 = ssub.s32 %s24, %s31
      %s38 = sor.u32 %s36, %s37
      %p39 = scmp.eq.s32.totalorder %s38, 0
      %s41 = sadd.s32 %s40, 1
      %s42 = scalar_select %p39, %s40, %s41
      %p45 = pneg %p39
      %p46 = scmp.eq.s32.totalorder %s16, 1
      %p47 = por %p45, %p46
      %p48 = scmp.ne.s32.totalorder %s40, %s43
      %p49 = scmp.eq.s32.totalorder %s16, 0
      %p50 = por %p48, %p49
      %p51 = scmp.ne.s32.totalorder %s40, %s43
      %p52 = scmp.eq.s32.totalorder %s21, 1
      %p53 = por %p51, %p52
      %p54 = scmp.ne.s32.totalorder %s43, %s44
      %p55 = scmp.eq.s32.totalorder %s21, 0
      %p56 = por %p54, %p55
      %p57 = scmp.ne.s32.totalorder %s43, %s44
      %p58 = scmp.eq.s32.totalorder %s22, 1
      %p59 = por %p57, %p58
      %p61 = scmp.ne.s32.totalorder %s44, %s60
      %p62 = scmp.eq.s32.totalorder %s22, 0
      %p63 = por %p61, %p62
      %s64 = ssub.s32 %s23, %s35
      %p65 = scmp.eq.s32.totalorder %s64, 0
      %s67 = sadd.s32 %s66, 1
      %s68 = scalar_select %p65, %s66, %s67
      %p71 = pneg %p65
      %p72 = scmp.eq.s32.totalorder %s16, 1
      %p73 = por %p71, %p72
      %p74 = scmp.ne.s32.totalorder %s66, %s69
      %p75 = scmp.eq.s32.totalorder %s16, 0
      %p76 = por %p74, %p75
      %p77 = scmp.ne.s32.totalorder %s66, %s69
      %p78 = scmp.eq.s32.totalorder %s21, 1
      %p79 = por %p77, %p78
      %p80 = scmp.ne.s32.totalorder %s69, %s70
      %p81 = scmp.eq.s32.totalorder %s21, 0
      %p82 = por %p80, %p81
      %p83 = scmp.ne.s32.totalorder %s69, %s70
      %p84 = scmp.eq.s32.totalorder %s22, 1
      %p85 = por %p83, %p84
      %p87 = scmp.ne.s32.totalorder %s70, %s86
      %p88 = scmp.eq.s32.totalorder %s22, 0
      %p89 = por %p87, %p88
      %s90 = ssub.s32 %s23, %s35
      %p91 = scmp.eq.s32.totalorder %s90, 0
      %s93 = sadd.s32 %s92, 1
      %s94 = scalar_select %p91, %s92, %s93
      %p97 = pneg %p91
      %p98 = scmp.eq.s32.totalorder %s16, 1
      %p99 = por %p97, %p98
      %p100 = scmp.ne.s32.totalorder %s92, %s95
      %p101 = scmp.eq.s32.totalorder %s16, 0
      %p102 = por %p100, %p101
      %p103 = scmp.ne.s32.totalorder %s92, %s95
      %p104 = scmp.eq.s32.totalorder %s21, 1
      %p105 = por %p103, %p104
      %p106 = scmp.ne.s32.totalorder %s95, %s96
      %p107 = scmp.eq.s32.totalorder %s21, 0
      %p108 = por %p106, %p107
      %p109 = scmp.ne.s32.totalorder %s95, %s96
      %p110 = scmp.eq.s32.totalorder %s22, 1
      %p111 = por %p109, %p110
      %p113 = scmp.ne.s32.totalorder %s96, %s112
      %p114 = scmp.eq.s32.totalorder %s22, 0
      %p115 = por %p113, %p114
      %s116 = ssub.s32 %s23, %s35
      %p117 = scmp.eq.s32.totalorder %s116, 0
      %s119 = sadd.s32 %s118, 1
      %s120 = scalar_select %p117, %s118, %s119
      %p123 = pneg %p117
      %p124 = scmp.eq.s32.totalorder %s16, 1
      %p125 = por %p123, %p124
      %p126 = scmp.ne.s32.totalorder %s118, %s121
      %p127 = scmp.eq.s32.totalorder %s16, 0
      %p128 = por %p126, %p127
      %p129 = scmp.ne.s32.totalorder %s118, %s121
      %p130 = scmp.eq.s32.totalorder %s21, 1
      %p131 = por %p129, %p130
      %p132 = scmp.ne.s32.totalorder %s121, %s122
      %p133 = scmp.eq.s32.totalorder %s21, 0
      %p134 = por %p132, %p133
      %p135 = scmp.ne.s32.totalorder %s121, %s122
      %p136 = scmp.eq.s32.totalorder %s22, 1
      %p137 = por %p135, %p136
      %p139 = scmp.ne.s32.totalorder %s122, %s138
      %p140 = scmp.eq.s32.totalorder %s22, 0
      %p141 = por %p139, %p140
      %s142 = ssub.s32 %s23, %s35
      %s143 = ssub.s32 %s24, %s31
      %s144 = sor.u32 %s142, %s143
      %p145 = scmp.eq.s32.totalorder %s144, 0
      %s147 = sadd.s32 %s146, 1
      %s148 = scalar_select %p145, %s146, %s147
      %p151 = pneg %p145
      %p152 = scmp.eq.s32.totalorder %s16, 1
      %p153 = por %p151, %p152
      %p154 = scmp.ne.s32.totalorder %s146, %s149
      %p155 = scmp.eq.s32.totalorder %s16, 0
      %p156 = por %p154, %p155
      %p157 = scmp.ne.s32.totalorder %s146, %s149
      %p158 = scmp.eq.s32.totalorder %s21, 1
      %p159 = por %p157, %p158
      %p160 = scmp.ne.s32.totalorder %s149, %s150
      %p161 = scmp.eq.s32.totalorder %s21, 0
      %p162 = por %p160, %p161
      %p163 = scmp.ne.s32.totalorder %s149, %s150
      %p164 = scmp.eq.s32.totalorder %s22, 1
      %p165 = por %p163, %p164
      %p167 = scmp.ne.s32.totalorder %s150, %s166
      %p168 = scmp.eq.s32.totalorder %s22, 0
      %p169 = por %p167, %p168
      %p170 = scmp.le.s32.totalorder 1, %s16
      %p171 = scmp.lt.s32.totalorder %s16, 3
      %p172 = pnand %p170, %p171
      %p173 = pneg %p172
      // Predicated region
      $region9: #{tpu_custom_call.1} parent=5 // pred_check
        _
      $region10: #{tpu_custom_call.1} parent=5 // pred_check_branch
        %175 = sbr.rel (%p172) target = $region12
      $region11: #{tpu_custom_call.1} parent=5 // pred_region
        %s176 = ssub.s32 %s16, 1
      $region12: #{tpu_custom_call.1} parent=5 // pred_fallthru
        _
      %p177 = scmp.lt.s32.totalorder %s16, 2
      // Predicated region
      $region13: #{tpu_custom_call.1} parent=5 // pred_check
        %p178 = pneg %p177
      $region14: #{tpu_custom_call.1} parent=5 // pred_check_branch
        %180 = sbr.rel (%p178) target = $region16
      $region15: #{tpu_custom_call.1} parent=5 // pred_region
        // Predicated region
        $region17: #{tpu_custom_call.1} parent=15 // pred_check
          %p181 = pneg %p50
        $region18: #{tpu_custom_call.1} parent=15 // pred_check_branch
          %183 = sbr.rel (%p181) target = $region20
        $region19: #{tpu_custom_call.1} parent=15 // pred_region
          %s184 = smul.u32 2, %s24
          %p185 = scmp.lt.s32.totalorder %s23, 1
          %s186 = scalar_select %p185, %s23, 1
          %p187 = scmp.lt.s32.totalorder %s184, 1
          %s188 = scalar_select %p187, %s184, 1
          %s189 = smul.addr %s186, 2
          %s190 = sadd.s32 %s188, %s189
          %s191 = smul.addr %s190, 8
          %s192 = scalar_lea.vmem %s0, %s191
          %s193 = smul.u32 2, %s24
        $region20: #{tpu_custom_call.1} parent=15 // pred_fallthru
          _
        // Predicated region
        $region21: #{tpu_custom_call.1} parent=15 // pred_check
          %p194 = pneg %p76
        $region22: #{tpu_custom_call.1} parent=15 // pred_check_branch
          %196 = sbr.rel (%p194) target = $region24
        $region23: #{tpu_custom_call.1} parent=15 // pred_region
          %p197 = scmp.lt.s32.totalorder %s23, 1
          %s198 = scalar_select %p197, %s23, 1
          %s199 = scalar_lea.vmem %s1, %s198
        $region24: #{tpu_custom_call.1} parent=15 // pred_fallthru
          _
        // Predicated region
        $region25: #{tpu_custom_call.1} parent=15 // pred_check
          %p200 = pneg %p102
        $region26: #{tpu_custom_call.1} parent=15 // pred_check_branch
          %202 = sbr.rel (%p200) target = $region28
        $region27: #{tpu_custom_call.1} parent=15 // pred_region
          %p203 = scmp.lt.s32.totalorder %s23, 1
          %s204 = scalar_select %p203, %s23, 1
          %s205 = scalar_lea.vmem %s2, %s204
        $region28: #{tpu_custom_call.1} parent=15 // pred_fallthru
          _
        // Predicated region
        $region29: #{tpu_custom_call.1} parent=15 // pred_check
          %p206 = pneg %p128
        $region30: #{tpu_custom_call.1} parent=15 // pred_check_branch
          %208 = sbr.rel (%p206) target = $region32
        $region31: #{tpu_custom_call.1} parent=15 // pred_region
          %s209 = sand.u32 %s118, 1
          %s210 = scalar_lea.sflag [#allocation3], %s209
          %s211 = sand.u32 %s118, 1
          %s212 = smul.addr %s211, 128
          %s213 = scalar_lea.vmem [#allocation2], %s212
          %s215 = ssub.s32 2048, 2048
          %216 = vsyncadd %s210, %s215
          %s217 = smul.addr %s23, 16
          %s218 = smul.addr %s217, 128
          %s219 = scalar_lea.hbm %s3, %s218
          %s220 = sshll.u32 %s213, 4
          %s221 = int_to_ptr.vmem [resolvable:$true] %s220
          %226 = dma.hbm_to_vmem [thread:$0]  %s219, 2048, %s221, %s210, 128, 128, 8
        $region32: #{tpu_custom_call.1} parent=15 // pred_fallthru
          _
      $region16: #{tpu_custom_call.1} parent=5 // pred_fallthru
        _
      %p227 = scmp.le.s32.totalorder 1, %s16
      %p228 = scmp.lt.s32.totalorder %s16, 3
      %p229 = pnand %p227, %p228
      %p230 = pneg %p229
      // Predicated region
      $region33: #{tpu_custom_call.1} parent=5 // pred_check
        _
      $region34: #{tpu_custom_call.1} parent=5 // pred_check_branch
        %232 = sbr.rel (%p229) target = $region36
      $region35: #{tpu_custom_call.1} parent=5 // pred_region
        %s233 = ssub.s32 %s16, 1
        %s234 = sand.u32 %s121, 1
        %s235 = scalar_lea.sflag [#allocation3], %s234
        %s236 = sand.u32 %s121, 1
        %s237 = smul.addr %s236, 128
        %s238 = scalar_lea.vmem [#allocation2], %s237
        // Predicated region
        $region37: #{tpu_custom_call.1} parent=35 // pred_check
          %p239 = pneg %p134
        $region38: #{tpu_custom_call.1} parent=35 // pred_check_branch
          %241 = sbr.rel (%p239) target = $region40
        $region39: #{tpu_custom_call.1} parent=35 // pred_region
          %242 = dma.done %s235, 2048
        $region40: #{tpu_custom_call.1} parent=35 // pred_fallthru
          _
        %s243 = smul.u32 2, %s26
        %p244 = scmp.lt.s32.totalorder %s25, 1
        %s245 = scalar_select %p244, %s25, 1
        %p246 = scmp.lt.s32.totalorder %s243, 1
        %s247 = scalar_select %p246, %s243, 1
        %s248 = smul.addr %s245, 2
        %s249 = sadd.s32 %s247, %s248
        %s250 = smul.addr %s249, 8
        %s251 = scalar_lea.vmem %s0, %s250
        %p252 = pneg %p56
        %p253 = pneg %p53
        %p254 = scmp.lt.s32.totalorder %s25, 1
        %s255 = scalar_select %p254, %s25, 1
        %s256 = scalar_lea.vmem %s1, %s255
        %p257 = pneg %p82
        %p258 = pneg %p79
        %p259 = scmp.lt.s32.totalorder %s25, 1
        %s260 = scalar_select %p259, %s25, 1
        %s261 = scalar_lea.vmem %s2, %s260
        %p262 = pneg %p108
        %p263 = pneg %p105
        %s264 = sand.u32 %s121, 1
        %s265 = scalar_lea.sflag [#allocation3], %s264
        %s266 = sand.u32 %s121, 1
        %s267 = smul.addr %s266, 128
        %s268 = scalar_lea.vmem [#allocation2], %s267
        %p269 = pneg %p134
        %p270 = pneg %p131
        %p271 = pneg %p162
        %p272 = pneg %p159
        %s273 = sand.u32 %s149, 1
        %s274 = scalar_lea.sflag [#allocation4], %s273
        %s275 = sand.u32 %s149, 1
        %s276 = smul.addr %s275, 16
        %s277 = scalar_lea.vmem [#allocation5], %s276
        %s278 = smul.u32 2, %s26
        %p279 = scmp.lt.s32.totalorder %s25, 1
        %s280 = scalar_select %p279, %s25, 1
        %p281 = scmp.lt.s32.totalorder %s278, 1
        %s282 = scalar_select %p281, %s278, 1
        %s283 = smul.addr %s280, 2
        %s284 = sadd.s32 %s282, %s283
        %s285 = smul.addr %s284, 8
        %s286 = scalar_lea.vmem %s0, %s285
        %s287 = smul.u32 2, %s26
        %p288 = scmp.lt.s32.totalorder %s25, 1
        %s289 = scalar_select %p288, %s25, 1
        %s290 = scalar_lea.vmem %s1, %s289
        %p291 = scmp.lt.s32.totalorder %s25, 1
        %s292 = scalar_select %p291, %s25, 1
        %s293 = scalar_lea.vmem %s2, %s292
        %s294 = smul.u32 2, %s26
        %v295 = vld [vmem:[%s286] sm:$0xff]
        %v296 = vld [vmem:[%s286 + $0x8] sm:$0xff]
        %v297 = vld [vmem:[%s290] sm:$0x1]
        %299 = vset.pattern.permute.xlu0 0
        %300 = vperm.xlu0 %299, %v295
        %v301 = vpop.permute.xlu0 %300
        %304 = vset.pattern.permute.xlu0 0
        %305 = vperm.xlu0 %304, %v296
        %v306 = vpop.permute.xlu0 %305
        %v309 = vlaneseq
        %v310 = vshrl.u32 %v309, 7
        %v311 = vsub.s32 0, %v310
        %v312 = vrot.slane %v297, %v311
        %v314 = vsub.f32 %v301, %v312
        %v315 = vsub.f32 %v306, %v312
        %v316 = vld [vmem:[%s293] sm:$0x1]
        %v317 = vmul.f32 %v314, %v314
        %v318 = vmul.f32 %v315, %v315
        %v320 = vlaneseq
        %v321 = vshrl.u32 %v320, 7
        %v322 = vsub.s32 0, %v321
        %v323 = vrot.slane %v316, %v322
        %v325 = vsub.f32 %v323, %v317
        %v326 = vsub.f32 %v323, %v318
        %327 = vmax.xlane.f32.xlu0 %v325
        %v328 = vpop.xlane.xlu0 %327
        %329 = vmax.xlane.f32.xlu0 %v326
        %v330 = vpop.xlane.xlu0 %329
        %v331 = vsub.f32 %v325, %v328
        %v332 = vsub.f32 %v326, %v330
        %v333 = vmul.f32 %v331, 1.442695
        %v334 = vpow.pop %v333
        %v335 = vmul.f32 %v332, 1.442695
        %v336 = vpow.pop %v335
        %337 = vadd.xlane.f32.xlu0 %v334
        %v338 = vpop.xlane.xlu0 %337
        %339 = vadd.xlane.f32.xlu0 %v336
        %v340 = vpop.xlane.xlu0 %339
        %v341 = vld [vmem:[%s238] sm:$0xff]
        %v342 = vld [vmem:[%s238 + $0x8] sm:$0xff]
        %v343 = vld [vmem:[%s238 + $0x10] sm:$0xff]
        %v344 = vld [vmem:[%s238 + $0x18] sm:$0xff]
        %v345 = vld [vmem:[%s238 + $0x20] sm:$0xff]
        %v346 = vld [vmem:[%s238 + $0x28] sm:$0xff]
        %v347 = vld [vmem:[%s238 + $0x30] sm:$0xff]
        %v348 = vld [vmem:[%s238 + $0x38] sm:$0xff]
        %v349 = vld [vmem:[%s238 + $0x40] sm:$0xff]
        %v350 = vld [vmem:[%s238 + $0x48] sm:$0xff]
        %v351 = vld [vmem:[%s238 + $0x50] sm:$0xff]
        %v352 = vld [vmem:[%s238 + $0x58] sm:$0xff]
        %v353 = vld [vmem:[%s238 + $0x60] sm:$0xff]
        %v354 = vld [vmem:[%s238 + $0x68] sm:$0xff]
        %v355 = vld [vmem:[%s238 + $0x70] sm:$0xff]
        %v356 = vld [vmem:[%s238 + $0x78] sm:$0xff]
        %357 = vmatprep.subr.mxu0 0.0
        %358 = vmatpush1.msra.mxu0 %v356
        %359 = vmatprep.subr.mxu0 0.0
        %360 = vmatpush1.msra.mxu0 %v355
        %361 = vmatprep.subr.mxu0 0.0
        %362 = vmatpush1.msra.mxu0 %v354
        %363 = vmatprep.subr.mxu0 0.0
        %364 = vmatpush1.msra.mxu0 %v353
        %365 = vmatprep.subr.mxu0 0.0
        %366 = vmatpush1.msra.mxu0 %v352
        %367 = vmatprep.subr.mxu0 0.0
        %368 = vmatpush1.msra.mxu0 %v351
        %369 = vmatprep.subr.mxu0 0.0
        %370 = vmatpush1.msra.mxu0 %v350
        %371 = vmatprep.subr.mxu0 0.0
        %372 = vmatpush1.msra.mxu0 %v349
        %373 = vmatprep.subr.mxu0 0.0
        %374 = vmatpush1.msra.mxu0 %v348
        %375 = vmatprep.subr.mxu0 0.0
        %376 = vmatpush1.msra.mxu0 %v347
        %377 = vmatprep.subr.mxu0 0.0
        %378 = vmatpush1.msra.mxu0 %v346
        %379 = vmatprep.subr.mxu0 0.0
        %380 = vmatpush1.msra.mxu0 %v345
        %381 = vmatprep.subr.mxu0 0.0
        %382 = vmatpush1.msra.mxu0 %v344
        %383 = vmatprep.subr.mxu0 0.0
        %384 = vmatpush1.msra.mxu0 %v343
        %385 = vmatprep.subr.mxu0 0.0
        %386 = vmatpush1.msra.mxu0 %v342
        %387 = vmatprep.subr.mxu0 0.0
        %388 = vmatpush1.msra.mxu0 %v341
        %389 = vmatprep.subr.mxu0 0.0
        %390 = vmatpush2.msra.mxu0 0.0
        %391 = vmatprep.subr.mxu0 0.0
        %392 = vmatpush2.msra.mxu0 0.0
        %393 = vmatprep.subr.mxu0 0.0
        %394 = vmatpush2.msra.mxu0 0.0
        %395 = vmatprep.subr.mxu0 0.0
        %396 = vmatpush2.msra.mxu0 0.0
        %397 = vmatprep.subr.mxu0 0.0
        %398 = vmatpush2.msra.mxu0 0.0
        %399 = vmatprep.subr.mxu0 0.0
        %400 = vmatpush2.msra.mxu0 0.0
        %401 = vmatprep.subr.mxu0 0.0
        %402 = vmatpush2.msra.mxu0 0.0
        %403 = vmatprep.subr.mxu0 0.0
        %404 = vmatpush2.msra.mxu0 0.0
        %405 = vmatprep.subr.mxu0 0.0
        %406 = vmatpush2.msra.mxu0 0.0
        %407 = vmatprep.subr.mxu0 0.0
        %408 = vmatpush2.msra.mxu0 0.0
        %409 = vmatprep.subr.mxu0 0.0
        %410 = vmatpush2.msra.mxu0 0.0
        %411 = vmatprep.subr.mxu0 0.0
        %412 = vmatpush2.msra.mxu0 0.0
        %413 = vmatprep.subr.mxu0 0.0
        %414 = vmatpush2.msra.mxu0 0.0
        %415 = vmatprep.subr.mxu0 0.0
        %416 = vmatpush2.msra.mxu0 0.0
        %417 = vmatprep.subr.mxu0 0.0
        %418 = vmatpush2.msra.mxu0 0.0
        %419 = vmatprep.subr.mxu0 0.0
        %420 = vmatpush2.msra.mxu0 0.0
        %421 = vmatprep.mubr.f32.mxu0 0.0
        %422 = vmatmul.mubr.f32.gmra.mxu0 %v334
        %v423 = vpop.f32.mrf.mxu0
        %v424 = vadd.f32 0.0, %v423
        %v425 = vpop.f32.mrf.mxu0
        %426 = vmatprep.mubr.f32.mxu0 0.0
        %427 = vmatmul.mubr.f32.gmra.mxu0 %v336
        %v428 = vpop.f32.mrf.mxu0
        %v429 = vadd.f32 0.0, %v428
        %v430 = vpop.f32.mrf.mxu0
        %431 = vdwg.mxu0
        %v432 = vrcp.pop %v338
        %v433 = vrcp.pop %v340
        %v434 = vmul.f32 %v424, %v432
        %v435 = vmul.f32 %v429, %v433
        %436 = vst [vmem:[%s277] sm:$0xff] %v434
        %437 = vst [vmem:[%s277 + $0x8] sm:$0xff] %v435
        %s438 = sand.u32 %s149, 1
        %s439 = scalar_lea.sflag [#allocation4], %s438
        %s440 = sand.u32 %s149, 1
        %s441 = smul.addr %s440, 16
        %s442 = scalar_lea.vmem [#allocation5], %s441
        // Predicated region
        $region41: #{tpu_custom_call.1} parent=35 // pred_check
          %p443 = pneg %p159
        $region42: #{tpu_custom_call.1} parent=35 // pred_check_branch
          %445 = sbr.rel (%p443) target = $region44
        $region43: #{tpu_custom_call.1} parent=35 // pred_region
          %s446 = smul.u32 2, %s26
          %s448 = ssub.s32 256, 256
          %449 = vsyncadd %s439, %s448
          %s450 = smul.addr %s25, 2
          %s451 = sadd.s32 %s446, %s450
          %s452 = smul.addr %s451, 128
          %s453 = scalar_lea.hbm %s4, %s452
          %s454 = sshll.u32 %s442, 4
          %s455 = int_to_ptr.vmem [resolvable:$true] %s454
          %460 = dma.vmem_to_hbm [thread:$0]  %s455, 256, %s453, %s439, 128, 128, 8
        $region44: #{tpu_custom_call.1} parent=35 // pred_fallthru
          _
      $region36: #{tpu_custom_call.1} parent=5 // pred_fallthru
        _
      %p461 = scmp.le.s32.totalorder 2, %s16
      // Predicated region
      $region45: #{tpu_custom_call.1} parent=5 // pred_check
        %p462 = pneg %p461
      $region46: #{tpu_custom_call.1} parent=5 // pred_check_branch
        %464 = sbr.rel (%p462) target = $region48
      $region47: #{tpu_custom_call.1} parent=5 // pred_region
        %s465 = ssub.s32 %s16, 2
        // Predicated region
        $region49: #{tpu_custom_call.1} parent=47 // pred_check
          %p466 = pneg %p165
        $region50: #{tpu_custom_call.1} parent=47 // pred_check_branch
          %468 = sbr.rel (%p466) target = $region52
        $region51: #{tpu_custom_call.1} parent=47 // pred_region
          %s469 = sand.u32 %s150, 1
          %s470 = scalar_lea.sflag [#allocation4], %s469
          %s471 = sand.u32 %s150, 1
          %s472 = smul.addr %s471, 16
          %s473 = scalar_lea.vmem [#allocation5], %s472
          %474 = dma.done %s470, 256
        $region52: #{tpu_custom_call.1} parent=47 // pred_fallthru
          _
      $region48: #{tpu_custom_call.1} parent=5 // pred_fallthru
        _
    $region6: #{tpu_custom_call.1} parent=1 // loop_footer
      %s20 = sadd.s32 1, %s16
    $region7: #{tpu_custom_call.1} parent=1 // loop_footer_branch
      %15 = sbr.rel target = $region3
    $region8: #{tpu_custom_call.1} parent=1 // loop_exit
      _
    %475 = vsyncpa [#allocation3], 1
    %s476 = scalar_lea.sflag [#allocation3], 1
    %477 = vsyncpa %s476, 1
    %478 = vsyncpa [#allocation4], 1
    %s479 = scalar_lea.sflag [#allocation4], 1
    %480 = vsyncpa %s479, 1

</llo_original>
